<compile_context>
chip_gen: v7x
topology: tpu7x:2x2x1
jax: 0.10.0
libtpu: 0.0.40
codegen_flags: <defaults>
</compile_context>

<pallas_src>
import functools

import jax
import jax.numpy as jnp
from jax.experimental import pallas as pl
from jax.experimental.pallas import tpu as pltpu


def _round_up(x, m):
    return ((x + m - 1) // m) * m


def decoder_kernel(num_layers, hidden_dim, vocab,
                   ids_ref, embed_ref, h0_ref, c0_ref, *rest):
    """rest = [w_0, b_0, ..., w_{L-1}, b_{L-1}, w_fc, b_fc, pred_ref]

    w_l : (in_dim + H, 4H) bf16   (concat of W_ih^T and W_hh^T)
    b_l : (1, 4H)          f32    (b_ih + b_hh)
    w_fc: (H, OUT_PAD)     bf16   (vocab axis zero-padded to 128-multiple)
    b_fc: (1, OUT_PAD)     f32
    """
    refs = list(rest)
    pred_ref = refs[-1]
    wfc_ref, bfc_ref = refs[-3], refs[-2]
    layer_refs = refs[:-3]

    H = hidden_dim
    B = ids_ref.shape[0]

    # --- fused embedding gather: one-hot(ids) @ embed_table (exact) ---------
    ids = ids_ref[...]                                           # (B, 1) int32
    vocab_iota = jax.lax.broadcasted_iota(jnp.int32, (B, vocab), 1)
    onehot = (vocab_iota == ids).astype(embed_ref.dtype)         # (B, V) bf16
    x = jnp.dot(onehot, embed_ref[...],
                preferred_element_type=jnp.float32)              # (B, E) f32

    # --- stacked LSTM, single time step --------------------------------------
    for layer in range(num_layers):
        w = layer_refs[2 * layer][...]                           # (in+H, 4H) bf16
        b = layer_refs[2 * layer + 1][...]                       # (1, 4H)    f32
        h_prev = h0_ref[layer]                                   # (B, H)     f32
        c_prev = c0_ref[layer]                                   # (B, H)     f32

        # fused ih/hh matmul: one MXU push per layer instead of two.
        xh = jnp.concatenate([x, h_prev], axis=-1).astype(w.dtype)   # (B, in+H)
        gates = jnp.dot(xh, w, preferred_element_type=jnp.float32) + b  # (B, 4H)

        # activate the whole gates slab once, then slice (i, f, g, o order).
        sig = jax.nn.sigmoid(gates)
        tnh = jnp.tanh(gates)
        i = sig[:, 0:H]
        f = sig[:, H:2 * H]
        g = tnh[:, 2 * H:3 * H]
        o = sig[:, 3 * H:4 * H]

        c_new = f * c_prev + i * g
        x = o * jnp.tanh(c_new)                                  # feeds next layer
        # TODO(synk): inter-layer dropout skipped (drop=0.0 in the reference).

    # --- fc(output.squeeze(0)), lane-dense padded output ---------------------
    pred_ref[...] = (jnp.dot(x.astype(wfc_ref.dtype), wfc_ref[...],
                             preferred_element_type=jnp.float32)
                     + bfc_ref[...])


def decoder_forward(inputs, hidden, cell, params, *, num_layers, hidden_dim):
    """Mirrors Decoder.forward: returns (pred, hidden, cell)."""
    B = inputs.shape[0]
    vocab = params["embed"].shape[0]
    out_dim = params["out_dim"]
    out_pad = params["fc_w"].shape[1]

    ids = inputs.astype(jnp.int32).reshape(B, 1)

    kernel_args = [ids, params["embed"], hidden, cell]
    for layer in range(num_layers):
        kernel_args += [params["w"][layer], params["b"][layer]]
    kernel_args += [params["fc_w"], params["fc_b"]]

    pred_padded = pl.pallas_call(
        functools.partial(decoder_kernel, num_layers, hidden_dim, vocab),
        out_shape=jax.ShapeDtypeStruct((B, out_pad), jnp.float32),
        in_specs=[pl.BlockSpec(memory_space=pltpu.MemorySpace.VMEM)] * len(kernel_args),
        out_specs=pl.BlockSpec(memory_space=pltpu.MemorySpace.VMEM),
    )(*kernel_args)

    # slice the lane-padded vocab axis back to out_dim.
    return pred_padded[:, :out_dim], hidden, cell


def decoder_reference(inputs, hidden, cell, params, *, num_layers, hidden_dim):
    """Pure-JAX reference of the same forward pass (same bf16 matmul operands)."""
    H = hidden_dim
    out_dim = params["out_dim"]
    x = jnp.take(params["embed"], inputs, axis=0).astype(jnp.float32)
    for layer in range(num_layers):
        xh = jnp.concatenate([x, hidden[layer]], axis=-1).astype(jnp.bfloat16)
        gates = jnp.dot(xh, params["w"][layer],
                        preferred_element_type=jnp.float32) + params["b"][layer]
        sig = jax.nn.sigmoid(gates)
        tnh = jnp.tanh(gates)
        i = sig[:, 0:H]
        f = sig[:, H:2 * H]
        g = tnh[:, 2 * H:3 * H]
        o = sig[:, 3 * H:4 * H]
        c_new = f * cell[layer] + i * g
        x = o * jnp.tanh(c_new)
    pred = (jnp.dot(x.astype(jnp.bfloat16), params["fc_w"],
                    preferred_element_type=jnp.float32) + params["fc_b"])
    return pred[:, :out_dim], hidden, cell


def init_params(key, out_dim, embed_dim, hidden_dim, num_layers):
    """Synthetic parameters (shapes match nn.Embedding / nn.LSTM / nn.Linear),
    pre-fused and pre-padded for the kernel."""
    keys = jax.random.split(key, 4 + 4 * num_layers)
    scale = 1.0 / jnp.sqrt(hidden_dim)
    out_pad = _round_up(out_dim, 128)

    fc_w = jax.random.uniform(keys[1], (hidden_dim, out_dim), jnp.float32, -scale, scale)
    fc_b = jax.random.uniform(keys[2], (1, out_dim), jnp.float32, -scale, scale)
    fc_w_pad = jnp.zeros((hidden_dim, out_pad), jnp.float32).at[:, :out_dim].set(fc_w)
    fc_b_pad = jnp.zeros((1, out_pad), jnp.float32).at[:, :out_dim].set(fc_b)

    params = {
        "out_dim": out_dim,
        "embed": jax.random.normal(keys[0], (out_dim, embed_dim),
                                   jnp.float32).astype(jnp.bfloat16),
        "fc_w": fc_w_pad.astype(jnp.bfloat16),
        "fc_b": fc_b_pad,                       # bias stays f32 (VPU add)
        "w": [],
        "b": [],
    }
    for layer in range(num_layers):
        in_dim = embed_dim if layer == 0 else hidden_dim
        k0, k1, k2, k3 = keys[4 + 4 * layer: 8 + 4 * layer]
        w_ih = jax.random.uniform(k0, (in_dim, 4 * hidden_dim), jnp.float32, -scale, scale)
        w_hh = jax.random.uniform(k1, (hidden_dim, 4 * hidden_dim), jnp.float32,
                                  -scale, scale)
        b_ih = jax.random.uniform(k2, (1, 4 * hidden_dim), jnp.float32, -scale, scale)
        b_hh = jax.random.uniform(k3, (1, 4 * hidden_dim), jnp.float32, -scale, scale)
        # fused [W_ih; W_hh] stored bf16 (halves HBM->VMEM weight traffic).
        params["w"].append(jnp.concatenate([w_ih, w_hh], axis=0).astype(jnp.bfloat16))
        params["b"].append(b_ih + b_hh)
    return params


if __name__ == "__main__":
    OUT_DIM = 16      # vocab size
    EMBED_DIM = 32
    HIDDEN_DIM = 32   # 4H = 128 -> gates are exactly lane-aligned
    NUM_LAYERS = 2
    BATCH = 8

    key = jax.random.PRNGKey(0)
    k_params, k_tok, k_h, k_c = jax.random.split(key, 4)

    params = init_params(k_params, OUT_DIM, EMBED_DIM, HIDDEN_DIM, NUM_LAYERS)
    tokens = jax.random.randint(k_tok, (BATCH,), 0, OUT_DIM, jnp.int32)
    hidden = jax.random.normal(k_h, (NUM_LAYERS, BATCH, HIDDEN_DIM), jnp.float32)
    cell = jax.random.normal(k_c, (NUM_LAYERS, BATCH, HIDDEN_DIM), jnp.float32)

    pred, h_out, c_out = decoder_forward(
        tokens, hidden, cell, params, num_layers=NUM_LAYERS, hidden_dim=HIDDEN_DIM)
    jax.block_until_ready(pred)

    pred_ref, _, _ = decoder_reference(
        tokens, hidden, cell, params, num_layers=NUM_LAYERS, hidden_dim=HIDDEN_DIM)

    assert pred.shape == (BATCH, OUT_DIM)
    assert h_out.shape == hidden.shape and c_out.shape == cell.shape
    assert jnp.allclose(pred, pred_ref, atol=2e-3, rtol=2e-3), (
        float(jnp.max(jnp.abs(pred - pred_ref))))

    print("KERNEL_OK")
</pallas_src>

<mosaic_0001>
module attributes {stable_mosaic.version = 11 : i64} {
  func.func @decoder_kernel(%arg0: memref<8x1xi32, #tpu.memory_space<vmem>>, %arg1: memref<16x32xbf16, #tpu.memory_space<vmem>>, %arg2: memref<2x8x32xf32, #tpu.memory_space<vmem>>, %arg3: memref<2x8x32xf32, #tpu.memory_space<vmem>>, %arg4: memref<64x128xbf16, #tpu.memory_space<vmem>>, %arg5: memref<1x128xf32, #tpu.memory_space<vmem>>, %arg6: memref<64x128xbf16, #tpu.memory_space<vmem>>, %arg7: memref<1x128xf32, #tpu.memory_space<vmem>>, %arg8: memref<32x128xbf16, #tpu.memory_space<vmem>>, %arg9: memref<1x128xf32, #tpu.memory_space<vmem>>, %arg10: memref<8x128xf32, #tpu.memory_space<vmem>>) attributes {dimension_semantics = [], scalar_prefetch = 0 : i64, scratch_operands = 0 : i64, tpu.core_type = #tpu.core_type<tc>} {
    %c0 = arith.constant 0 : index
    %c0_0 = arith.constant 0 : index
    %0 = vector.load %arg0[%c0, %c0_0] : memref<8x1xi32, #tpu.memory_space<vmem>>, vector<8x1xi32>
    %1 = tpu.iota {dimensions = array<i32: 1>} : vector<8x16xi32>
    %2 = vector.broadcast %0 : vector<8x1xi32> to vector<8x16xi32>
    %3 = arith.cmpi eq, %1, %2 : vector<8x16xi32>
    %4 = arith.extui %3 : vector<8x16xi1> to vector<8x16xi32>
    %5 = arith.sitofp %4 : vector<8x16xi32> to vector<8x16xf32>
    %6 = arith.truncf %5 : vector<8x16xf32> to vector<8x16xbf16>
    %c0_1 = arith.constant 0 : index
    %c0_2 = arith.constant 0 : index
    %7 = vector.load %arg1[%c0_1, %c0_2] : memref<16x32xbf16, #tpu.memory_space<vmem>>, vector<16x32xbf16>
    %cst = arith.constant dense<0.000000e+00> : vector<8x32xf32>
    %8 = tpu.matmul %6, %7, %cst {dimension_numbers = #tpu.dot_dimension_numbers<[1], [0], [0], [1], [0, 0, 1, 1], [], []>} : vector<8x16xbf16>, vector<16x32xbf16>, vector<8x32xf32> -> vector<8x32xf32>
    %c0_3 = arith.constant 0 : index
    %c0_4 = arith.constant 0 : index
    %9 = vector.load %arg4[%c0_3, %c0_4] : memref<64x128xbf16, #tpu.memory_space<vmem>>, vector<64x128xbf16>
    %c0_5 = arith.constant 0 : index
    %c0_6 = arith.constant 0 : index
    %10 = vector.load %arg5[%c0_5, %c0_6] : memref<1x128xf32, #tpu.memory_space<vmem>>, vector<1x128xf32>
    %c0_7 = arith.constant 0 : index
    %c0_8 = arith.constant 0 : index
    %c0_9 = arith.constant 0 : index
    %11 = vector.load %arg2[%c0_7, %c0_8, %c0_9] : memref<2x8x32xf32, #tpu.memory_space<vmem>>, vector<1x8x32xf32>
    %12 = vector.shape_cast %11 : vector<1x8x32xf32> to vector<8x32xf32>
    %c0_10 = arith.constant 0 : index
    %c0_11 = arith.constant 0 : index
    %c0_12 = arith.constant 0 : index
    %13 = vector.load %arg3[%c0_10, %c0_11, %c0_12] : memref<2x8x32xf32, #tpu.memory_space<vmem>>, vector<1x8x32xf32>
    %14 = vector.shape_cast %13 : vector<1x8x32xf32> to vector<8x32xf32>
    %15 = tpu.concatenate %8, %12 in 1 : vector<8x32xf32>, vector<8x32xf32> -> vector<8x64xf32>
    %16 = arith.truncf %15 : vector<8x64xf32> to vector<8x64xbf16>
    %cst_13 = arith.constant dense<0.000000e+00> : vector<8x128xf32>
    %17 = tpu.matmul %16, %9, %cst_13 {dimension_numbers = #tpu.dot_dimension_numbers<[1], [0], [0], [1], [0, 0, 1, 1], [], []>} : vector<8x64xbf16>, vector<64x128xbf16>, vector<8x128xf32> -> vector<8x128xf32>
    %18 = vector.broadcast %10 : vector<1x128xf32> to vector<8x128xf32>
    %19 = arith.addf %17, %18 : vector<8x128xf32>
    %20 = arith.negf %19 : vector<8x128xf32>
    %21 = math.exp %20 : vector<8x128xf32>
    %cst_14 = arith.constant 1.000000e+00 : f32
    %22 = vector.broadcast %cst_14 : f32 to vector<8x128xf32>
    %23 = arith.addf %22, %21 : vector<8x128xf32>
    %24 = arith.divf %22, %23 : vector<8x128xf32>
    %25 = math.tanh %19 : vector<8x128xf32>
    %26 = vector.extract_strided_slice %24 {offsets = [0, 0], sizes = [8, 32], strides = [1, 1]} : vector<8x128xf32> to vector<8x32xf32>
    %27 = vector.extract_strided_slice %24 {offsets = [0, 32], sizes = [8, 32], strides = [1, 1]} : vector<8x128xf32> to vector<8x32xf32>
    %28 = vector.extract_strided_slice %25 {offsets = [0, 64], sizes = [8, 32], strides = [1, 1]} : vector<8x128xf32> to vector<8x32xf32>
    %29 = vector.extract_strided_slice %24 {offsets = [0, 96], sizes = [8, 32], strides = [1, 1]} : vector<8x128xf32> to vector<8x32xf32>
    %30 = arith.mulf %27, %14 : vector<8x32xf32>
    %31 = arith.mulf %26, %28 : vector<8x32xf32>
    %32 = arith.addf %30, %31 : vector<8x32xf32>
    %33 = math.tanh %32 : vector<8x32xf32>
    %34 = arith.mulf %29, %33 : vector<8x32xf32>
    %c0_15 = arith.constant 0 : index
    %c0_16 = arith.constant 0 : index
    %35 = vector.load %arg6[%c0_15, %c0_16] : memref<64x128xbf16, #tpu.memory_space<vmem>>, vector<64x128xbf16>
    %c0_17 = arith.constant 0 : index
    %c0_18 = arith.constant 0 : index
    %36 = vector.load %arg7[%c0_17, %c0_18] : memref<1x128xf32, #tpu.memory_space<vmem>>, vector<1x128xf32>
    %c1 = arith.constant 1 : index
    %c0_19 = arith.constant 0 : index
    %c0_20 = arith.constant 0 : index
    %37 = vector.load %arg2[%c1, %c0_19, %c0_20] : memref<2x8x32xf32, #tpu.memory_space<vmem>>, vector<1x8x32xf32>
    %38 = vector.shape_cast %37 : vector<1x8x32xf32> to vector<8x32xf32>
    %c1_21 = arith.constant 1 : index
    %c0_22 = arith.constant 0 : index
    %c0_23 = arith.constant 0 : index
    %39 = vector.load %arg3[%c1_21, %c0_22, %c0_23] : memref<2x8x32xf32, #tpu.memory_space<vmem>>, vector<1x8x32xf32>
    %40 = vector.shape_cast %39 : vector<1x8x32xf32> to vector<8x32xf32>
    %41 = tpu.concatenate %34, %38 in 1 : vector<8x32xf32>, vector<8x32xf32> -> vector<8x64xf32>
    %42 = arith.truncf %41 : vector<8x64xf32> to vector<8x64xbf16>
    %cst_24 = arith.constant dense<0.000000e+00> : vector<8x128xf32>
    %43 = tpu.matmul %42, %35, %cst_24 {dimension_numbers = #tpu.dot_dimension_numbers<[1], [0], [0], [1], [0, 0, 1, 1], [], []>} : vector<8x64xbf16>, vector<64x128xbf16>, vector<8x128xf32> -> vector<8x128xf32>
    %44 = vector.broadcast %36 : vector<1x128xf32> to vector<8x128xf32>
    %45 = arith.addf %43, %44 : vector<8x128xf32>
    %46 = arith.negf %45 : vector<8x128xf32>
    %47 = math.exp %46 : vector<8x128xf32>
    %cst_25 = arith.constant 1.000000e+00 : f32
    %48 = vector.broadcast %cst_25 : f32 to vector<8x128xf32>
    %49 = arith.addf %48, %47 : vector<8x128xf32>
    %50 = arith.divf %48, %49 : vector<8x128xf32>
    %51 = math.tanh %45 : vector<8x128xf32>
    %52 = vector.extract_strided_slice %50 {offsets = [0, 0], sizes = [8, 32], strides = [1, 1]} : vector<8x128xf32> to vector<8x32xf32>
    %53 = vector.extract_strided_slice %50 {offsets = [0, 32], sizes = [8, 32], strides = [1, 1]} : vector<8x128xf32> to vector<8x32xf32>
    %54 = vector.extract_strided_slice %51 {offsets = [0, 64], sizes = [8, 32], strides = [1, 1]} : vector<8x128xf32> to vector<8x32xf32>
    %55 = vector.extract_strided_slice %50 {offsets = [0, 96], sizes = [8, 32], strides = [1, 1]} : vector<8x128xf32> to vector<8x32xf32>
    %56 = arith.mulf %53, %40 : vector<8x32xf32>
    %57 = arith.mulf %52, %54 : vector<8x32xf32>
    %58 = arith.addf %56, %57 : vector<8x32xf32>
    %59 = math.tanh %58 : vector<8x32xf32>
    %60 = arith.mulf %55, %59 : vector<8x32xf32>
    %61 = arith.truncf %60 : vector<8x32xf32> to vector<8x32xbf16>
    %c0_26 = arith.constant 0 : index
    %c0_27 = arith.constant 0 : index
    %62 = vector.load %arg8[%c0_26, %c0_27] : memref<32x128xbf16, #tpu.memory_space<vmem>>, vector<32x128xbf16>
    %cst_28 = arith.constant dense<0.000000e+00> : vector<8x128xf32>
    %63 = tpu.matmul %61, %62, %cst_28 {dimension_numbers = #tpu.dot_dimension_numbers<[1], [0], [0], [1], [0, 0, 1, 1], [], []>} : vector<8x32xbf16>, vector<32x128xbf16>, vector<8x128xf32> -> vector<8x128xf32>
    %c0_29 = arith.constant 0 : index
    %c0_30 = arith.constant 0 : index
    %64 = vector.load %arg9[%c0_29, %c0_30] : memref<1x128xf32, #tpu.memory_space<vmem>>, vector<1x128xf32>
    %65 = vector.broadcast %64 : vector<1x128xf32> to vector<8x128xf32>
    %66 = arith.addf %63, %65 : vector<8x128xf32>
    %c0_31 = arith.constant 0 : index
    %c0_32 = arith.constant 0 : index
    %67 = vector.load %arg10[%c0_31, %c0_32] : memref<8x128xf32, #tpu.memory_space<vmem>>, vector<8x128xf32>
    tpu.vector_store %arg10[%c0_31, %c0_32], %66 {strides = array<i32>} : memref<8x128xf32, #tpu.memory_space<vmem>>, vector<8x128xf32>,
    return
  }
}

</mosaic_0001>

<llo_original>
// kernel: tpu_custom_call.1
$region0: #{tpu_custom_call.1}
  #allocation0 [shape = 'u32[]', space=smem, size = 0x4, offset = 0x4, fixed_abs, tag = 'smem constant byte address 0x4 - core index']
  #allocation1 [shape = 'u32[144,128]{1,0:T(1,128)}', space=vmem, size = 0x12000, scoped, tag = 'internal scratch']
  %s0 = inlined_call_operand.vmem [shape: s32[8,1], index: 0, kind: input, shape index: {}]
  %s1 = inlined_call_operand.hbm [shape: bf16[16,32], index: 1, kind: input, shape index: {}]
  %s2 = inlined_call_operand.vmem [shape: f32[2,8,32], index: 2, kind: input, shape index: {}]
  %s3 = inlined_call_operand.hbm [shape: f32[2,8,32], index: 3, kind: input, shape index: {}]
  %s4 = inlined_call_operand.hbm [shape: bf16[64,128], index: 4, kind: input, shape index: {}]
  %s5 = inlined_call_operand.vmem [shape: f32[1,128], index: 5, kind: input, shape index: {}]
  %s6 = inlined_call_operand.hbm [shape: bf16[64,128], index: 6, kind: input, shape index: {}]
  %s7 = inlined_call_operand.vmem [shape: f32[1,128], index: 7, kind: input, shape index: {}]
  %s8 = inlined_call_operand.vmem [shape: bf16[32,128], index: 8, kind: input, shape index: {}]
  %s9 = inlined_call_operand.vmem [shape: f32[1,128], index: 9, kind: input, shape index: {}]
  %s10 = inlined_call_operand.hbm [shape: f32[8,128], index: 10, kind: output, shape index: {}]
  %s11 = sld [smem:[#allocation0]]
  $region66: #{tpu_custom_call.1} parent=0
    _
  %s13 = ssub.s32 1, %s11
  %s14 = scalar_select 0, %s13, %s11
  $region1: #{tpu_custom_call.1} parent=0
    #allocation2 [shape = 'u8[4096]{0}', space=vmem, size = 0x1000, scoped, tag = 'input window, operand 1, single buffered']
    #allocation3 [shape = 's32[1]{0}', space=sflag, size = 0x4, scoped, tag = 'scoped memory for tpu_custom_call.1']
    #allocation4 [shape = 's32[1]{0}', space=sflag, size = 0x4, scoped, tag = 'scoped memory for tpu_custom_call.1']
    #allocation5 [shape = 'u8[8192]{0}', space=vmem, size = 0x2000, scoped, tag = 'input window, operand 3, single buffered']
    #allocation6 [shape = 's32[1]{0}', space=sflag, size = 0x4, scoped, tag = 'scoped memory for tpu_custom_call.1']
    #allocation7 [shape = 'u8[16384]{0}', space=vmem, size = 0x4000, scoped, tag = 'input window, operand 4, single buffered']
    #allocation8 [shape = 'u8[16384]{0}', space=vmem, size = 0x4000, scoped, tag = 'input window, operand 6, single buffered']
    #allocation9 [shape = 's32[1]{0}', space=sflag, size = 0x4, scoped, tag = 'scoped memory for tpu_custom_call.1']
    #allocation10 [shape = 'u8[4096]{0}', space=vmem, size = 0x1000, scoped, tag = 'output window, operand 0, single buffered']
    %15 = vsyncpa [#allocation3], 0
    %16 = vsyncpa [#allocation6], 0
    %17 = vsyncpa [#allocation9], 0
    %18 = vsyncpa [#allocation4], 0
    // Predicated region
    $region2: #{tpu_custom_call.1} parent=1 // pred_check
      _
    $region3: #{tpu_custom_call.1} parent=1 // pred_check_branch
      %20 = sbr.rel (0) target = $region5
    $region4: #{tpu_custom_call.1} parent=1 // pred_region
      _
    $region5: #{tpu_custom_call.1} parent=1 // pred_fallthru
      _
    // Predicated region
    $region6: #{tpu_custom_call.1} parent=1 // pred_check
      _
    $region7: #{tpu_custom_call.1} parent=1 // pred_check_branch
      %22 = sbr.rel (0) target = $region9
    $region8: #{tpu_custom_call.1} parent=1 // pred_region
      %s24 = ssub.s32 128, 128
      %25 = vsyncadd [#allocation3], %s24
      %s26 = sshll.u32 [#allocation2], 4
      %s27 = int_to_ptr.vmem [resolvable:$true] %s26
      %32 = dma.hbm_to_vmem [thread:$0]  %s1, 128, %s27, [#allocation3], 64, 64, 4
    $region9: #{tpu_custom_call.1} parent=1 // pred_fallthru
      _
    // Predicated region
    $region10: #{tpu_custom_call.1} parent=1 // pred_check
      _
    $region11: #{tpu_custom_call.1} parent=1 // pred_check_branch
      %34 = sbr.rel (0) target = $region13
    $region12: #{tpu_custom_call.1} parent=1 // pred_region
      _
    $region13: #{tpu_custom_call.1} parent=1 // pred_fallthru
      _
    // Predicated region
    $region14: #{tpu_custom_call.1} parent=1 // pred_check
      _
    $region15: #{tpu_custom_call.1} parent=1 // pred_check_branch
      %36 = sbr.rel (0) target = $region17
    $region16: #{tpu_custom_call.1} parent=1 // pred_region
      %s38 = ssub.s32 256, 256
      %39 = vsyncadd [#allocation6], %s38
      %s40 = sshll.u32 [#allocation5], 4
      %s41 = int_to_ptr.vmem [resolvable:$true] %s40
      %46 = dma.hbm_to_vmem [thread:$0]  %s3, 256, %s41, [#allocation6], 128, 128, 8
    $region17: #{tpu_custom_call.1} parent=1 // pred_fallthru
      _
    // Predicated region
    $region18: #{tpu_custom_call.1} parent=1 // pred_check
      _
    $region19: #{tpu_custom_call.1} parent=1 // pred_check_branch
      %48 = sbr.rel (0) target = $region21
    $region20: #{tpu_custom_call.1} parent=1 // pred_region
      %s50 = ssub.s32 512, 512
      %51 = vsyncadd [#allocation6], %s50
      %s52 = sshll.u32 [#allocation7], 4
      %s53 = int_to_ptr.vmem [resolvable:$true] %s52
      %58 = dma.hbm_to_vmem [thread:$0]  %s4, 512, %s53, [#allocation6], 64, 64, 4
    $region21: #{tpu_custom_call.1} parent=1 // pred_fallthru
      _
    // Predicated region
    $region22: #{tpu_custom_call.1} parent=1 // pred_check
      _
    $region23: #{tpu_custom_call.1} parent=1 // pred_check_branch
      %60 = sbr.rel (0) target = $region25
    $region24: #{tpu_custom_call.1} parent=1 // pred_region
      _
    $region25: #{tpu_custom_call.1} parent=1 // pred_fallthru
      _
    // Predicated region
    $region26: #{tpu_custom_call.1} parent=1 // pred_check
      _
    $region27: #{tpu_custom_call.1} parent=1 // pred_check_branch
      %62 = sbr.rel (0) target = $region29
    $region28: #{tpu_custom_call.1} parent=1 // pred_region
      %s64 = ssub.s32 512, 512
      %65 = vsyncadd [#allocation9], %s64
      %s66 = sshll.u32 [#allocation8], 4
      %s67 = int_to_ptr.vmem [resolvable:$true] %s66
      %72 = dma.hbm_to_vmem [thread:$0]  %s6, 512, %s67, [#allocation9], 64, 64, 4
    $region29: #{tpu_custom_call.1} parent=1 // pred_fallthru
      _
    // Predicated region
    $region30: #{tpu_custom_call.1} parent=1 // pred_check
      _
    $region31: #{tpu_custom_call.1} parent=1 // pred_check_branch
      %74 = sbr.rel (0) target = $region33
    $region32: #{tpu_custom_call.1} parent=1 // pred_region
      _
    $region33: #{tpu_custom_call.1} parent=1 // pred_fallthru
      _
    // Predicated region
    $region34: #{tpu_custom_call.1} parent=1 // pred_check
      _
    $region35: #{tpu_custom_call.1} parent=1 // pred_check_branch
      %76 = sbr.rel (0) target = $region37
    $region36: #{tpu_custom_call.1} parent=1 // pred_region
      _
    $region37: #{tpu_custom_call.1} parent=1 // pred_fallthru
      _
    // Predicated region
    $region38: #{tpu_custom_call.1} parent=1 // pred_check
      _
    $region39: #{tpu_custom_call.1} parent=1 // pred_check_branch
      %78 = sbr.rel (0) target = $region41
    $region40: #{tpu_custom_call.1} parent=1 // pred_region
      _
    $region41: #{tpu_custom_call.1} parent=1 // pred_fallthru
      _
    // Predicated region
    $region42: #{tpu_custom_call.1} parent=1 // pred_check
      _
    $region43: #{tpu_custom_call.1} parent=1 // pred_check_branch
      %80 = sbr.rel (0) target = $region45
    $region44: #{tpu_custom_call.1} parent=1 // pred_region
      %81 = dma.done [#allocation3], 128
    $region45: #{tpu_custom_call.1} parent=1 // pred_fallthru
      _
    // Predicated region
    $region46: #{tpu_custom_call.1} parent=1 // pred_check
      _
    $region47: #{tpu_custom_call.1} parent=1 // pred_check_branch
      %83 = sbr.rel (0) target = $region49
    $region48: #{tpu_custom_call.1} parent=1 // pred_region
      %84 = dma.done [#allocation6], 256
    $region49: #{tpu_custom_call.1} parent=1 // pred_fallthru
      _
    // Predicated region
    $region50: #{tpu_custom_call.1} parent=1 // pred_check
      _
    $region51: #{tpu_custom_call.1} parent=1 // pred_check_branch
      %86 = sbr.rel (0) target = $region53
    $region52: #{tpu_custom_call.1} parent=1 // pred_region
      %87 = dma.done [#allocation6], 512
    $region53: #{tpu_custom_call.1} parent=1 // pred_fallthru
      _
    // Predicated region
    $region54: #{tpu_custom_call.1} parent=1 // pred_check
      _
    $region55: #{tpu_custom_call.1} parent=1 // pred_check_branch
      %89 = sbr.rel (0) target = $region57
    $region56: #{tpu_custom_call.1} parent=1 // pred_region
      %90 = dma.done [#allocation9], 512
    $region57: #{tpu_custom_call.1} parent=1 // pred_fallthru
      _
    %v92 = vld [vmem:[%s0] sm:$0xff]
    %v93 = vlaneseq
    %v94 = vand.u32 %v93, 127
    %95 = vset.pattern.permute.xlu0 0
    %96 = vperm.xlu0 %95, %v92
    %v97 = vpop.permute.xlu0 %96
    %vm98 = vcmp.eq.s32.totalorder %v94, %v97
    %v99 = vsel %vm98, 1, 0
    %v100 = vcvt.s32.f32 %v99
    %v101 = vpack.c.bf16 %v100, %v100
    %v102 = vld [vmem:[#allocation2] sm:$0xf]
    %v103 = vld [vmem:[#allocation2 + $0x4] sm:$0xf]
    %v106 = vunpack.c.l.b16 %v102
    %v107 = vunpack.c.l.b16 %v103
    %v108 = vpack.c.b16 %v107, %v106
    %vm110 = vcmask 130048
    %v112 = vsel %vm110, %v101, 0
    %114 = vmatprep.subr.bf16.mxu0 0
    %115 = vmatpush1.bf16.msra.mxu0 %v108
    %116 = vmatprep.subr.bf16.mxu0 0
    %117 = vmatpush1.bf16.msra.mxu0 0
    %118 = vmatprep.subr.bf16.mxu0 0
    %119 = vmatpush1.bf16.msra.mxu0 0
    %120 = vmatprep.subr.bf16.mxu0 0
    %121 = vmatpush1.bf16.msra.mxu0 0
    %122 = vmatprep.subr.bf16.mxu0 0
    %123 = vmatpush1.bf16.msra.mxu0 0
    %124 = vmatprep.subr.bf16.mxu0 0
    %125 = vmatpush1.bf16.msra.mxu0 0
    %126 = vmatprep.subr.bf16.mxu0 0
    %127 = vmatpush1.bf16.msra.mxu0 0
    %128 = vmatprep.subr.bf16.mxu0 0
    %129 = vmatpush1.bf16.msra.mxu0 0
    %130 = vmatprep.subr.bf16.mxu0 0
    %131 = vmatpush1.bf16.msra.mxu0 0
    %132 = vmatprep.subr.bf16.mxu0 0
    %133 = vmatpush1.bf16.msra.mxu0 0
    %134 = vmatprep.subr.bf16.mxu0 0
    %135 = vmatpush1.bf16.msra.mxu0 0
    %136 = vmatprep.subr.bf16.mxu0 0
    %137 = vmatpush1.bf16.msra.mxu0 0
    %138 = vmatprep.subr.bf16.mxu0 0
    %139 = vmatpush1.bf16.msra.mxu0 0
    %140 = vmatprep.subr.bf16.mxu0 0
    %141 = vmatpush1.bf16.msra.mxu0 0
    %142 = vmatprep.subr.bf16.mxu0 0
    %143 = vmatpush1.bf16.msra.mxu0 0
    %144 = vmatprep.subr.bf16.mxu0 0
    %145 = vmatpush1.bf16.msra.mxu0 0
    %146 = vmatprep.mubr.bf16.mxu0 0
    %147 = vmatmul.mubr.bf16.gmra.mrb[0].mxu0 %v112
    %v148 = vpop.f32.mrb[0].mxu0
    %v149 = vadd.f32 0.0, %v148
    %v150 = vpop.f32.mrb[0].mxu0
    %v151 = vpop.f32.mrb[0].mxu0
    %v152 = vpop.f32.mrb[0].mxu0
    %153 = vdwg.mxu0
    %v154 = vld [vmem:[#allocation7] sm:$0xf]
    %v155 = vld [vmem:[#allocation7 + $0x4] sm:$0xf]
    %v156 = vld [vmem:[#allocation7 + $0x8] sm:$0xf]
    %v157 = vld [vmem:[#allocation7 + $0xc] sm:$0xf]
    %v158 = vld [vmem:[#allocation7 + $0x10] sm:$0xf]
    %v159 = vld [vmem:[#allocation7 + $0x14] sm:$0xf]
    %v160 = vld [vmem:[#allocation7 + $0x18] sm:$0xf]
    %v161 = vld [vmem:[#allocation7 + $0x1c] sm:$0xf]
    %v162 = vld [vmem:[%s5] sm:$0x1]
    %v163 = vld [vmem:[%s2] sm:$0xff]
    %v164 = vld [vmem:[#allocation5] sm:$0xff]
    %166 = vrot.lane.b32.xlu0 %v163, 32
    %v167 = vpop.permute.xlu0 %166
    %vm169 = vcmask 261120
    %v170 = vsel %vm169, %v149, %v167
    %v171 = vpack.c.bf16 %v170, %v170
    %v173 = vlaneseq
    %v174 = vshrl.u32 %v173, 7
    %v175 = vsub.s32 0, %v174
    %v176 = vrot.slane %v162, %v175
    %v186 = vunpack.c.l.b16 %v154
    %v187 = vunpack.c.l.b16 %v155
    %v188 = vunpack.c.l.b16 %v156
    %v189 = vunpack.c.l.b16 %v157
    %v190 = vunpack.c.l.b16 %v158
    %v191 = vunpack.c.l.b16 %v159
    %v192 = vunpack.c.l.b16 %v160
    %v193 = vunpack.c.l.b16 %v161
    %v194 = vpack.c.b16 %v187, %v186
    %v195 = vpack.c.b16 %v189, %v188
    %v196 = vpack.c.b16 %v191, %v190
    %v197 = vpack.c.b16 %v193, %v192
    %vm202 = vcmask 523264
    %v204 = vsel %vm202, %v171, 0
    %206 = vmatprep.subr.bf16.mxu0 0
    %207 = vmatpush1.bf16.msra.mxu0 %v194
    %208 = vmatprep.subr.bf16.mxu0 0
    %209 = vmatpush1.bf16.msra.mxu0 %v195
    %210 = vmatprep.subr.bf16.mxu0 0
    %211 = vmatpush1.bf16.msra.mxu0 %v196
    %212 = vmatprep.subr.bf16.mxu0 0
    %213 = vmatpush1.bf16.msra.mxu0 %v197
    %214 = vmatprep.subr.bf16.mxu0 0
    %215 = vmatpush1.bf16.msra.mxu0 0
    %216 = vmatprep.subr.bf16.mxu0 0
    %217 = vmatpush1.bf16.msra.mxu0 0
    %218 = vmatprep.subr.bf16.mxu0 0
    %219 = vmatpush1.bf16.msra.mxu0 0
    %220 = vmatprep.subr.bf16.mxu0 0
    %221 = vmatpush1.bf16.msra.mxu0 0
    %222 = vmatprep.subr.bf16.mxu0 0
    %223 = vmatpush1.bf16.msra.mxu0 0
    %224 = vmatprep.subr.bf16.mxu0 0
    %225 = vmatpush1.bf16.msra.mxu0 0
    %226 = vmatprep.subr.bf16.mxu0 0
    %227 = vmatpush1.bf16.msra.mxu0 0
    %228 = vmatprep.subr.bf16.mxu0 0
    %229 = vmatpush1.bf16.msra.mxu0 0
    %230 = vmatprep.subr.bf16.mxu0 0
    %231 = vmatpush1.bf16.msra.mxu0 0
    %232 = vmatprep.subr.bf16.mxu0 0
    %233 = vmatpush1.bf16.msra.mxu0 0
    %234 = vmatprep.subr.bf16.mxu0 0
    %235 = vmatpush1.bf16.msra.mxu0 0
    %236 = vmatprep.subr.bf16.mxu0 0
    %237 = vmatpush1.bf16.msra.mxu0 0
    %238 = vmatprep.mubr.bf16.mxu0 0
    %239 = vmatmul.mubr.bf16.gmra.mrb[0].mxu0 %v204
    %v240 = vpop.f32.mrb[0].mxu0
    %v241 = vadd.f32 %v176, %v240
    %v242 = vpop.f32.mrb[0].mxu0
    %v243 = vpop.f32.mrb[0].mxu0
    %v244 = vpop.f32.mrb[0].mxu0
    %245 = vdwg.mxu0
    %v246 = vxor.u32 %v241, 2147483648
    %v247 = vmul.f32 %v246, 1.442695
    %v248 = vpow.pop %v247
    %v249 = vadd.f32 %v248, 1.0
    %v250 = vrcp.pop %v249
    %v251 = vmul.f32 1.0, %v250
    %v252 = vtanh.pop %v241
    %254 = vrot.lane.b32.xlu0 %v164, 32
    %v255 = vpop.permute.xlu0 %254
    %v257 = vmul.f32 %v251, %v255
    %259 = vrot.lane.b32.xlu0 %v252, 64
    %v260 = vpop.permute.xlu0 %259
    %v262 = vmul.f32 %v251, %v260
    %264 = vrot.lane.b32.xlu0 %v262, 32
    %v265 = vpop.permute.xlu0 %264
    %v267 = vadd.f32 %v257, %v265
    %v268 = vtanh.pop %v267
    %270 = vrot.lane.b32.xlu0 %v268, 64
    %v271 = vpop.permute.xlu0 %270
    %v273 = vmul.f32 %v251, %v271
    %v274 = vld [vmem:[#allocation8] sm:$0xf]
    %v275 = vld [vmem:[#allocation8 + $0x4] sm:$0xf]
    %v276 = vld [vmem:[#allocation8 + $0x8] sm:$0xf]
    %v277 = vld [vmem:[#allocation8 + $0xc] sm:$0xf]
    %v278 = vld [vmem:[#allocation8 + $0x10] sm:$0xf]
    %v279 = vld [vmem:[#allocation8 + $0x14] sm:$0xf]
    %v280 = vld [vmem:[#allocation8 + $0x18] sm:$0xf]
    %v281 = vld [vmem:[#allocation8 + $0x1c] sm:$0xf]
    %v282 = vld [vmem:[%s7] sm:$0x1]
    %s283 = scalar_lea.vmem %s2, 8
    %v284 = vld [vmem:[%s283] sm:$0xff]
    %s285 = scalar_lea.vmem [#allocation5], 8
    %v286 = vld [vmem:[%s285] sm:$0xff]
    %288 = vrot.lane.b32.xlu0 %v273, 32
    %v289 = vpop.permute.xlu0 %288
    %292 = vrot.lane.b32.xlu0 %v284, 32
    %v293 = vpop.permute.xlu0 %292
    %v295 = vsel %vm169, %v289, %v293
    %v296 = vpack.c.bf16 %v295, %v295
    %v298 = vlaneseq
    %v299 = vshrl.u32 %v298, 7
    %v300 = vsub.s32 0, %v299
    %v301 = vrot.slane %v282, %v300
    %v311 = vunpack.c.l.b16 %v274
    %v312 = vunpack.c.l.b16 %v275
    %v313 = vunpack.c.l.b16 %v276
    %v314 = vunpack.c.l.b16 %v277
    %v315 = vunpack.c.l.b16 %v278
    %v316 = vunpack.c.l.b16 %v279
    %v317 = vunpack.c.l.b16 %v280
    %v318 = vunpack.c.l.b16 %v281
    %v319 = vpack.c.b16 %v312, %v311
    %v320 = vpack.c.b16 %v314, %v313
    %v321 = vpack.c.b16 %v316, %v315
    %v322 = vpack.c.b16 %v318, %v317
    %v328 = vsel %vm202, %v296, 0
    %330 = vmatprep.subr.bf16.mxu0 0
    %331 = vmatpush1.bf16.msra.mxu0 %v319
    %332 = vmatprep.subr.bf16.mxu0 0
    %333 = vmatpush1.bf16.msra.mxu0 %v320
    %334 = vmatprep.subr.bf16.mxu0 0
    %335 = vmatpush1.bf16.msra.mxu0 %v321
    %336 = vmatprep.subr.bf16.mxu0 0
    %337 = vmatpush1.bf16.msra.mxu0 %v322
    %338 = vmatprep.subr.bf16.mxu0 0
    %339 = vmatpush1.bf16.msra.mxu0 0
    %340 = vmatprep.subr.bf16.mxu0 0
    %341 = vmatpush1.bf16.msra.mxu0 0
    %342 = vmatprep.subr.bf16.mxu0 0
    %343 = vmatpush1.bf16.msra.mxu0 0
    %344 = vmatprep.subr.bf16.mxu0 0
    %345 = vmatpush1.bf16.msra.mxu0 0
    %346 = vmatprep.subr.bf16.mxu0 0
    %347 = vmatpush1.bf16.msra.mxu0 0
    %348 = vmatprep.subr.bf16.mxu0 0
    %349 = vmatpush1.bf16.msra.mxu0 0
    %350 = vmatprep.subr.bf16.mxu0 0
    %351 = vmatpush1.bf16.msra.mxu0 0
    %352 = vmatprep.subr.bf16.mxu0 0
    %353 = vmatpush1.bf16.msra.mxu0 0
    %354 = vmatprep.subr.bf16.mxu0 0
    %355 = vmatpush1.bf16.msra.mxu0 0
    %356 = vmatprep.subr.bf16.mxu0 0
    %357 = vmatpush1.bf16.msra.mxu0 0
    %358 = vmatprep.subr.bf16.mxu0 0
    %359 = vmatpush1.bf16.msra.mxu0 0
    %360 = vmatprep.subr.bf16.mxu0 0
    %361 = vmatpush1.bf16.msra.mxu0 0
    %362 = vmatprep.mubr.bf16.mxu0 0
    %363 = vmatmul.mubr.bf16.gmra.mrb[0].mxu0 %v328
    %v364 = vpop.f32.mrb[0].mxu0
    %v365 = vadd.f32 %v301, %v364
    %v366 = vpop.f32.mrb[0].mxu0
    %v367 = vpop.f32.mrb[0].mxu0
    %v368 = vpop.f32.mrb[0].mxu0
    %369 = vdwg.mxu0
    %v370 = vxor.u32 %v365, 2147483648
    %v371 = vmul.f32 %v370, 1.442695
    %v372 = vpow.pop %v371
    %v373 = vadd.f32 %v372, 1.0
    %v374 = vrcp.pop %v373
    %v375 = vmul.f32 1.0, %v374
    %v376 = vtanh.pop %v365
    %378 = vrot.lane.b32.xlu0 %v286, 32
    %v379 = vpop.permute.xlu0 %378
    %v381 = vmul.f32 %v375, %v379
    %383 = vrot.lane.b32.xlu0 %v376, 64
    %v384 = vpop.permute.xlu0 %383
    %v386 = vmul.f32 %v375, %v384
    %388 = vrot.lane.b32.xlu0 %v386, 32
    %v389 = vpop.permute.xlu0 %388
    %v391 = vadd.f32 %v381, %v389
    %v392 = vtanh.pop %v391
    %394 = vrot.lane.b32.xlu0 %v392, 64
    %v395 = vpop.permute.xlu0 %394
    %v397 = vmul.f32 %v375, %v395
    %v398 = vpack.c.bf16 %v397, %v397
    %v399 = vld [vmem:[%s8] sm:$0xf]
    %v400 = vld [vmem:[%s8 + $0x4] sm:$0xf]
    %v401 = vld [vmem:[%s8 + $0x8] sm:$0xf]
    %v402 = vld [vmem:[%s8 + $0xc] sm:$0xf]
    %v403 = vld [vmem:[%s9] sm:$0x1]
    %v405 = vlaneseq
    %v406 = vshrl.u32 %v405, 7
    %v407 = vsub.s32 0, %v406
    %v408 = vrot.slane %v403, %v407
    %411 = vrot.lane.b32.xlu0 %v398, 32
    %v412 = vpop.permute.xlu0 %411
    %v417 = vunpack.c.l.b16 %v399
    %v418 = vunpack.c.l.b16 %v400
    %v419 = vunpack.c.l.b16 %v401
    %v420 = vunpack.c.l.b16 %v402
    %v421 = vpack.c.b16 %v418, %v417
    %v422 = vpack.c.b16 %v420, %v419
    %v426 = vsel %vm169, %v412, 0
    %428 = vmatprep.subr.bf16.mxu0 0
    %429 = vmatpush1.bf16.msra.mxu0 %v421
    %430 = vmatprep.subr.bf16.mxu0 0
    %431 = vmatpush1.bf16.msra.mxu0 %v422
    %432 = vmatprep.subr.bf16.mxu0 0
    %433 = vmatpush1.bf16.msra.mxu0 0
    %434 = vmatprep.subr.bf16.mxu0 0
    %435 = vmatpush1.bf16.msra.mxu0 0
    %436 = vmatprep.subr.bf16.mxu0 0
    %437 = vmatpush1.bf16.msra.mxu0 0
    %438 = vmatprep.subr.bf16.mxu0 0
    %439 = vmatpush1.bf16.msra.mxu0 0
    %440 = vmatprep.subr.bf16.mxu0 0
    %441 = vmatpush1.bf16.msra.mxu0 0
    %442 = vmatprep.subr.bf16.mxu0 0
    %443 = vmatpush1.bf16.msra.mxu0 0
    %444 = vmatprep.subr.bf16.mxu0 0
    %445 = vmatpush1.bf16.msra.mxu0 0
    %446 = vmatprep.subr.bf16.mxu0 0
    %447 = vmatpush1.bf16.msra.mxu0 0
    %448 = vmatprep.subr.bf16.mxu0 0
    %449 = vmatpush1.bf16.msra.mxu0 0
    %450 = vmatprep.subr.bf16.mxu0 0
    %451 = vmatpush1.bf16.msra.mxu0 0
    %452 = vmatprep.subr.bf16.mxu0 0
    %453 = vmatpush1.bf16.msra.mxu0 0
    %454 = vmatprep.subr.bf16.mxu0 0
    %455 = vmatpush1.bf16.msra.mxu0 0
    %456 = vmatprep.subr.bf16.mxu0 0
    %457 = vmatpush1.bf16.msra.mxu0 0
    %458 = vmatprep.subr.bf16.mxu0 0
    %459 = vmatpush1.bf16.msra.mxu0 0
    %460 = vmatprep.mubr.bf16.mxu0 0
    %461 = vmatmul.mubr.bf16.gmra.mrb[0].mxu0 %v426
    %v462 = vpop.f32.mrb[0].mxu0
    %v463 = vadd.f32 %v408, %v462
    %v464 = vpop.f32.mrb[0].mxu0
    %v465 = vpop.f32.mrb[0].mxu0
    %v466 = vpop.f32.mrb[0].mxu0
    %467 = vdwg.mxu0
    %468 = vst [vmem:[#allocation10] sm:$0xff] %v463
    // Predicated region
    $region58: #{tpu_custom_call.1} parent=1 // pred_check
      _
    $region59: #{tpu_custom_call.1} parent=1 // pred_check_branch
      %470 = sbr.rel (0) target = $region61
    $region60: #{tpu_custom_call.1} parent=1 // pred_region
      %s472 = ssub.s32 128, 128
      %473 = vsyncadd [#allocation4], %s472
      %s475 = sshll.u32 [#allocation10], 4
      %s476 = int_to_ptr.vmem [resolvable:$true] %s475
      %478 = dma.vmem_to_hbm [thread:$0]  %s476, 128, %s10, [#allocation4]
    $region61: #{tpu_custom_call.1} parent=1 // pred_fallthru
      _
    // Predicated region
    $region62: #{tpu_custom_call.1} parent=1 // pred_check
      _
    $region63: #{tpu_custom_call.1} parent=1 // pred_check_branch
      %480 = sbr.rel (0) target = $region65
    $region64: #{tpu_custom_call.1} parent=1 // pred_region
      %481 = dma.done [#allocation4], 128
    $region65: #{tpu_custom_call.1} parent=1 // pred_fallthru
      _
    %482 = vsyncpa [#allocation3], 1
    %483 = vsyncpa [#allocation6], 1
    %484 = vsyncpa [#allocation9], 1
    %485 = vsyncpa [#allocation4], 1

</llo_original>
